<compile_context>
chip_gen: v6e
topology: v6e:2x2x1
jax: 0.10.0
libtpu: 0.0.40
codegen_flags: <defaults>
</compile_context>

<pallas_src>
import functools

import jax
import jax.numpy as jnp
from jax.experimental import pallas as pl
from jax.experimental.pallas import tpu as pltpu

_EPS = 1e-5


def _round_up(x, m):
    return ((x + m - 1) // m) * m


def _valid_tile_widths(c):
    """Channel tile widths needing no padding/masking: the full channel dim
    (always legal as the last block dim) plus any multiple-of-128 divisor."""
    widths = {c}
    if c % 128 == 0:
        widths.update(d for d in range(128, c + 1, 128) if c % d == 0)
    return sorted(widths, reverse=True)


# ---------------------------------------------------------------------------
# Fused single-pass kernel: stats + normalize + ReLU on one (N, tc) strip.
# ---------------------------------------------------------------------------
def _fused_bn_relu_kernel(x_ref, w_ref, b_ref, o_ref, *, inv_n):
    x = x_ref[...].astype(jnp.float32)                       # (N, tc)
    mean = jnp.sum(x, axis=0, keepdims=True) * inv_n          # (1, tc)
    xc = x - mean
    var = jnp.sum(xc * xc, axis=0, keepdims=True) * inv_n     # exact, biased
    scale = w_ref[...] * jax.lax.rsqrt(var + _EPS)
    y = xc * scale + b_ref[...]
    o_ref[...] = jnp.maximum(y, 0.0).astype(o_ref.dtype)


# ---------------------------------------------------------------------------
# Two-pass fallback (N too large for a VMEM-resident strip).
# ---------------------------------------------------------------------------
def _partial_stats_kernel(x_ref, pilot_ref, ps_ref, pq_ref, *, n_true, tn):
    """Per-tile partial sum / sum-of-squares of (x - pilot), ragged-N masked."""
    ni = pl.program_id(1)
    rows = jax.lax.broadcasted_iota(jnp.int32, x_ref.shape, 0) + ni * tn
    mask = rows < n_true
    xc = jnp.where(mask, x_ref[...].astype(jnp.float32) - pilot_ref[...], 0.0)
    ps_ref[...] = jnp.sum(xc, axis=0, keepdims=True).reshape(ps_ref.shape)
    pq_ref[...] = jnp.sum(xc * xc, axis=0, keepdims=True).reshape(pq_ref.shape)


def _norm_relu_kernel(x_ref, scale_ref, shift_ref, o_ref):
    """Lane-dense fused multiply-add + ReLU."""
    y = x_ref[...].astype(jnp.float32) * scale_ref[...] + shift_ref[...]
    o_ref[...] = jnp.maximum(y, 0.0).astype(o_ref.dtype)


def simple_norm(x, weight, bias, *, max_strip_elems=1 << 20):
    """x: (N, C); weight/bias: (C,).  Returns (N, C) in x.dtype."""
    n, c = x.shape
    inv_n = 1.0 / float(n)
    w2 = weight.astype(jnp.float32).reshape(1, c)
    b2 = bias.astype(jnp.float32).reshape(1, c)

    widths = _valid_tile_widths(c)
    strip_ok = [w for w in widths if n * w <= max_strip_elems]

    if strip_ok:
        # ---- Fused single pass: 1 read + 1 write of x. ----
        tc = strip_ok[0]
        if tc == c and c % 256 == 0:
            tc = c // 2        # >=2 parallel strips so both v7x TCs get work
        c_tiles = c // tc
        return pl.pallas_call(
            functools.partial(_fused_bn_relu_kernel, inv_n=inv_n),
            grid=(c_tiles,),
            in_specs=[
                pl.BlockSpec((n, tc), lambda ci: (0, ci)),
                pl.BlockSpec((1, tc), lambda ci: (0, ci)),
                pl.BlockSpec((1, tc), lambda ci: (0, ci)),
            ],
            out_specs=pl.BlockSpec((n, tc), lambda ci: (0, ci)),
            out_shape=jax.ShapeDtypeStruct((n, c), x.dtype),
            compiler_params=pltpu.CompilerParams(
                dimension_semantics=("parallel",),
                vmem_limit_bytes=48 * 1024 * 1024),
        )(x, w2, b2)

    # ---- Fallback: strip does not fit VMEM -> two passes over x. ----
    tc = next((w for w in widths if w <= 1024), widths[-1])
    tn = min(1024, _round_up(n, 8))
    max_tile_elems = 1 << 19                              # ~2 MiB f32 per tile
    if tn * tc > max_tile_elems:
        tn = max(8, (max_tile_elems // tc) // 8 * 8)
    c_tiles = c // tc
    n_tiles = pl.cdiv(n, tn)

    params = pltpu.CompilerParams(
        dimension_semantics=("parallel", "parallel"),
        vmem_limit_bytes=32 * 1024 * 1024)

    # Per-channel pilot value: accumulating (x - pilot) avoids the worst of
    # the E[x^2] - E[x]^2 cancellation when |mean| >> std.
    pilot = x[0:1, :].astype(jnp.float32)

    ps, pq = pl.pallas_call(
        functools.partial(_partial_stats_kernel, n_true=n, tn=tn),
        grid=(c_tiles, n_tiles),
        in_specs=[
            pl.BlockSpec((tn, tc), lambda ci, ni: (ni, ci)),
            pl.BlockSpec((1, tc), lambda ci, ni: (0, ci)),
        ],
        out_specs=[
            pl.BlockSpec((1, 1, tc), lambda ci, ni: (ni, 0, ci)),
            pl.BlockSpec((1, 1, tc), lambda ci, ni: (ni, 0, ci)),
        ],
        out_shape=[
            jax.ShapeDtypeStruct((n_tiles, 1, c), jnp.float32),
            jax.ShapeDtypeStruct((n_tiles, 1, c), jnp.float32),
        ],
        compiler_params=params,
    )(x, pilot)

    # Tiny O(C) combine + finalize in plain JAX.
    s = jnp.sum(ps[:, 0, :], axis=0)
    q = jnp.sum(pq[:, 0, :], axis=0)
    mean = pilot[0] + s * inv_n
    var = jnp.maximum(q * inv_n - (s * inv_n) ** 2, 0.0)
    scale_v = w2[0] * jax.lax.rsqrt(var + _EPS)
    shift_v = b2[0] - mean * scale_v
    scale = scale_v.reshape(1, c)
    shift = shift_v.reshape(1, c)

    return pl.pallas_call(
        _norm_relu_kernel,
        grid=(c_tiles, n_tiles),   # C outer: scale/shift blocks stay resident
        in_specs=[
            pl.BlockSpec((tn, tc), lambda ci, ni: (ni, ci)),
            pl.BlockSpec((1, tc), lambda ci, ni: (0, ci)),
            pl.BlockSpec((1, tc), lambda ci, ni: (0, ci)),
        ],
        out_specs=pl.BlockSpec((tn, tc), lambda ci, ni: (ni, ci)),
        out_shape=jax.ShapeDtypeStruct((n, c), x.dtype),
        compiler_params=params,
    )(x, scale, shift)


if __name__ == "__main__":
    hidden_dim = 32
    batch = 8

    key = jax.random.PRNGKey(0)
    k0, k1, k2 = jax.random.split(key, 3)

    # Deterministic, non-trivial affine params (PyTorch default is w=1, b=0;
    # perturbed so the affine path is exercised).
    weight = 1.0 + 0.1 * jnp.arange(hidden_dim, dtype=jnp.float32)
    bias = 0.05 * jnp.arange(hidden_dim, dtype=jnp.float32) - 0.5

    def reference(xx, ww, bb):
        xf = xx.astype(jnp.float32)
        m = jnp.mean(xf, axis=0, keepdims=True)
        v = jnp.mean((xf - m) ** 2, axis=0, keepdims=True)
        return jnp.maximum((xf - m) / jnp.sqrt(v + _EPS) * ww + bb, 0.0)

    # 1) Primary fused path, f32.
    x = jax.random.normal(k0, (batch, hidden_dim), dtype=jnp.float32)
    out = jax.block_until_ready(simple_norm(x, weight, bias))
    assert out.shape == x.shape and out.dtype == x.dtype
    assert jnp.allclose(out, reference(x, weight, bias), atol=1e-4, rtol=1e-4)

    # 2) Two-pass fallback (forced) with a ragged batch (13 not multiple of 8).
    x2 = jax.random.normal(k1, (13, hidden_dim), dtype=jnp.float32)
    out2 = jax.block_until_ready(simple_norm(x2, weight, bias, max_strip_elems=64))
    assert jnp.allclose(out2, reference(x2, weight, bias), atol=1e-4, rtol=1e-4)

    # 3) Fused path with native bf16 wire dtype (output stays bf16).
    x3 = jax.random.normal(k2, (10, hidden_dim), dtype=jnp.bfloat16)
    out3 = jax.block_until_ready(simple_norm(x3, weight, bias))
    assert out3.dtype == jnp.bfloat16
    assert jnp.allclose(out3.astype(jnp.float32), reference(x3, weight, bias),
                        atol=5e-2, rtol=5e-2)

    print("KERNEL_OK")
</pallas_src>

<mosaic_0001>
module attributes {stable_mosaic.version = 11 : i64} {
  func.func @_fused_bn_relu_kernel(%arg0: i32, %arg1: memref<8x32xf32, #tpu.memory_space<vmem>>, %arg2: memref<1x32xf32, #tpu.memory_space<vmem>>, %arg3: memref<1x32xf32, #tpu.memory_space<vmem>>, %arg4: memref<8x32xf32, #tpu.memory_space<vmem>>) attributes {dimension_semantics = [#tpu.dimension_semantics<parallel>], iteration_bounds = array<i64: 1>, scalar_prefetch = 0 : i64, scratch_operands = 0 : i64, tpu.core_type = #tpu.core_type<tc>, window_params = [{transform_indices = @transform_0, window_bounds = array<i64: 8, 32>}, {transform_indices = @transform_1, window_bounds = array<i64: 1, 32>}, {transform_indices = @transform_2, window_bounds = array<i64: 1, 32>}, {transform_indices = @transform_3, window_bounds = array<i64: 8, 32>}]} {
    %c0 = arith.constant 0 : index
    %c0_0 = arith.constant 0 : index
    %0 = vector.load %arg1[%c0, %c0_0] : memref<8x32xf32, #tpu.memory_space<vmem>>, vector<8x32xf32>
    %cst = arith.constant dense<0.000000e+00> : vector<32xf32>
    %1 = vector.multi_reduction <add>, %0, %cst [0] : vector<8x32xf32> to vector<32xf32>
    %2 = vector.shape_cast %1 : vector<32xf32> to vector<1x32xf32>
    %cst_1 = arith.constant 1.250000e-01 : f32
    %3 = vector.broadcast %cst_1 : f32 to vector<1x32xf32>
    %4 = arith.mulf %2, %3 : vector<1x32xf32>
    %5 = vector.broadcast %4 : vector<1x32xf32> to vector<8x32xf32>
    %6 = arith.subf %0, %5 : vector<8x32xf32>
    %7 = arith.mulf %6, %6 : vector<8x32xf32>
    %cst_2 = arith.constant dense<0.000000e+00> : vector<32xf32>
    %8 = vector.multi_reduction <add>, %7, %cst_2 [0] : vector<8x32xf32> to vector<32xf32>
    %9 = vector.shape_cast %8 : vector<32xf32> to vector<1x32xf32>
    %cst_3 = arith.constant 1.250000e-01 : f32
    %10 = vector.broadcast %cst_3 : f32 to vector<1x32xf32>
    %11 = arith.mulf %9, %10 : vector<1x32xf32>
    %c0_4 = arith.constant 0 : index
    %c0_5 = arith.constant 0 : index
    %12 = vector.load %arg2[%c0_4, %c0_5] : memref<1x32xf32, #tpu.memory_space<vmem>>, vector<1x32xf32>
    %cst_6 = arith.constant 9.99999974E-6 : f32
    %13 = vector.broadcast %cst_6 : f32 to vector<1x32xf32>
    %14 = arith.addf %11, %13 : vector<1x32xf32>
    %15 = math.rsqrt %14 : vector<1x32xf32>
    %16 = arith.mulf %12, %15 : vector<1x32xf32>
    %17 = vector.broadcast %16 : vector<1x32xf32> to vector<8x32xf32>
    %18 = arith.mulf %6, %17 : vector<8x32xf32>
    %c0_7 = arith.constant 0 : index
    %c0_8 = arith.constant 0 : index
    %19 = vector.load %arg3[%c0_7, %c0_8] : memref<1x32xf32, #tpu.memory_space<vmem>>, vector<1x32xf32>
    %20 = vector.broadcast %19 : vector<1x32xf32> to vector<8x32xf32>
    %21 = arith.addf %18, %20 : vector<8x32xf32>
    %cst_9 = arith.constant 0.000000e+00 : f32
    %22 = vector.broadcast %cst_9 : f32 to vector<8x32xf32>
    %23 = arith.maximumf %21, %22 : vector<8x32xf32>
    %c0_10 = arith.constant 0 : index
    %c0_11 = arith.constant 0 : index
    %24 = vector.load %arg4[%c0_10, %c0_11] : memref<8x32xf32, #tpu.memory_space<vmem>>, vector<8x32xf32>
    tpu.vector_store %arg4[%c0_10, %c0_11], %23 {strides = array<i32>} : memref<8x32xf32, #tpu.memory_space<vmem>>, vector<8x32xf32>,
    return
  }
  func.func @transform_0(%arg0: i32) -> (i32, i32) {
    %c0_i32 = arith.constant 0 : i32
    %c0_i32_0 = arith.constant 0 : i32
    return %c0_i32, %arg0 : i32, i32
  }
  func.func @transform_1(%arg0: i32) -> (i32, i32) {
    %c0_i32 = arith.constant 0 : i32
    %c0_i32_0 = arith.constant 0 : i32
    return %c0_i32, %arg0 : i32, i32
  }
  func.func @transform_2(%arg0: i32) -> (i32, i32) {
    %c0_i32 = arith.constant 0 : i32
    %c0_i32_0 = arith.constant 0 : i32
    return %c0_i32, %arg0 : i32, i32
  }
  func.func @transform_3(%arg0: i32) -> (i32, i32) {
    %c0_i32 = arith.constant 0 : i32
    %c0_i32_0 = arith.constant 0 : i32
    return %c0_i32, %arg0 : i32, i32
  }
}

</mosaic_0001>

<llo_original>
// kernel: tpu_custom_call.1
$region0: #{tpu_custom_call.1}
  #allocation0 [shape = 'u32[]', space=smem, size = 0x4, offset = 0x4, fixed_abs, tag = 'smem constant byte address 0x4 - core index']
  #allocation1 [shape = 'u32[144,128]{1,0:T(1,128)}', space=vmem, size = 0x12000, scoped, tag = 'internal scratch']
  %s0 = inlined_call_operand.hbm [shape: f32[8,32], index: 0, kind: input, shape index: {}]
  %s1 = inlined_call_operand.vmem [shape: f32[1,32], index: 1, kind: input, shape index: {}]
  %s2 = inlined_call_operand.vmem [shape: f32[1,32], index: 2, kind: input, shape index: {}]
  %s3 = inlined_call_operand.hbm [shape: f32[8,32], index: 3, kind: output, shape index: {}]
  %s4 = sld [smem:[#allocation0]]
  $region26: #{tpu_custom_call.1} parent=0
    _
  %s6 = ssub.s32 1, %s4
  %s7 = scalar_select 0, %s6, %s4
  $region1: #{tpu_custom_call.1} parent=0
    #allocation2 [shape = 'u8[4096]{0}', space=vmem, size = 0x1000, scoped, tag = 'input window, operand 0, single buffered']
    #allocation3 [shape = 's32[1]{0}', space=sflag, size = 0x4, scoped, tag = 'scoped memory for tpu_custom_call.1']
    #allocation4 [shape = 's32[1]{0}', space=sflag, size = 0x4, scoped, tag = 'scoped memory for tpu_custom_call.1']
    #allocation5 [shape = 'u8[4096]{0}', space=vmem, size = 0x1000, scoped, tag = 'output window, operand 0, single buffered']
    %8 = vsyncpa [#allocation3], 0
    %9 = vsyncpa [#allocation4], 0
    // Predicated region
    $region2: #{tpu_custom_call.1} parent=1 // pred_check
      _
    $region3: #{tpu_custom_call.1} parent=1 // pred_check_branch
      %11 = sbr.rel (0) target = $region5
    $region4: #{tpu_custom_call.1} parent=1 // pred_region
      %s13 = ssub.s32 128, 128
      %14 = vsyncadd [#allocation3], %s13
      %s16 = sshll.u32 [#allocation2], 4
      %s17 = int_to_ptr.vmem [resolvable:$true] %s16
      %19 = dma.hbm_to_vmem [thread:$0]  %s0, 128, %s17, [#allocation3]
    $region5: #{tpu_custom_call.1} parent=1 // pred_fallthru
      _
    // Predicated region
    $region6: #{tpu_custom_call.1} parent=1 // pred_check
      _
    $region7: #{tpu_custom_call.1} parent=1 // pred_check_branch
      %21 = sbr.rel (0) target = $region9
    $region8: #{tpu_custom_call.1} parent=1 // pred_region
      _
    $region9: #{tpu_custom_call.1} parent=1 // pred_fallthru
      _
    // Predicated region
    $region10: #{tpu_custom_call.1} parent=1 // pred_check
      _
    $region11: #{tpu_custom_call.1} parent=1 // pred_check_branch
      %23 = sbr.rel (0) target = $region13
    $region12: #{tpu_custom_call.1} parent=1 // pred_region
      _
    $region13: #{tpu_custom_call.1} parent=1 // pred_fallthru
      _
    // Predicated region
    $region14: #{tpu_custom_call.1} parent=1 // pred_check
      _
    $region15: #{tpu_custom_call.1} parent=1 // pred_check_branch
      %25 = sbr.rel (0) target = $region17
    $region16: #{tpu_custom_call.1} parent=1 // pred_region
      %26 = dma.done [#allocation3], 128
    $region17: #{tpu_custom_call.1} parent=1 // pred_fallthru
      _
    %v27 = vld [vmem:[#allocation2] sm:$0xff]
    %vm28 = vcmask 261120
    %v29 = vsel %vm28, %v27, 0.0
    %v30 = vrot.slane %v29, 4
    %v31 = vadd.f32 %v29, %v30
    %v32 = vrot.slane %v31, 2
    %v33 = vadd.f32 %v31, %v32
    %v34 = vrot.slane %v33, 1
    %v35 = vadd.f32 %v33, %v34
    %v36 = vmul.f32 %v35, 0.125
    %v37 = vsub.f32 %v27, %v36
    %v38 = vmul.f32 %v37, %v37
    %v39 = vsel %vm28, %v38, 0.0
    %v40 = vrot.slane %v39, 4
    %v41 = vadd.f32 %v39, %v40
    %v42 = vrot.slane %v41, 2
    %v43 = vadd.f32 %v41, %v42
    %v44 = vrot.slane %v43, 1
    %v45 = vadd.f32 %v43, %v44
    %v46 = vmul.f32 %v45, 0.125
    %v47 = vld [vmem:[%s1] sm:$0x1]
    %v48 = vadd.f32 %v46, 1e-05
    %v49 = vrsqrt.pop %v48
    %v50 = vmul.f32 %v47, %v49
    %v52 = vlaneseq
    %v53 = vshrl.u32 %v52, 7
    %v54 = vsub.s32 0, %v53
    %v55 = vrot.slane %v50, %v54
    %v57 = vmul.f32 %v37, %v55
    %v58 = vld [vmem:[%s2] sm:$0x1]
    %v60 = vlaneseq
    %v61 = vshrl.u32 %v60, 7
    %v62 = vsub.s32 0, %v61
    %v63 = vrot.slane %v58, %v62
    %v65 = vadd.f32 %v57, %v63
    %v66 = vmax.f32 %v65, 0.0
    %67 = vst.msk [vmem:[#allocation5] sm:$0xff] %vm28, %v66
    // Predicated region
    $region18: #{tpu_custom_call.1} parent=1 // pred_check
      _
    $region19: #{tpu_custom_call.1} parent=1 // pred_check_branch
      %69 = sbr.rel (0) target = $region21
    $region20: #{tpu_custom_call.1} parent=1 // pred_region
      %s71 = ssub.s32 128, 128
      %72 = vsyncadd [#allocation4], %s71
      %s74 = sshll.u32 [#allocation5], 4
      %s75 = int_to_ptr.vmem [resolvable:$true] %s74
      %77 = dma.vmem_to_hbm [thread:$0]  %s75, 128, %s3, [#allocation4]
    $region21: #{tpu_custom_call.1} parent=1 // pred_fallthru
      _
    // Predicated region
    $region22: #{tpu_custom_call.1} parent=1 // pred_check
      _
    $region23: #{tpu_custom_call.1} parent=1 // pred_check_branch
      %79 = sbr.rel (0) target = $region25
    $region24: #{tpu_custom_call.1} parent=1 // pred_region
      %80 = dma.done [#allocation4], 128
    $region25: #{tpu_custom_call.1} parent=1 // pred_fallthru
      _
    %81 = vsyncpa [#allocation3], 1
    %82 = vsyncpa [#allocation4], 1

</llo_original>
